<compile_context>
chip_gen: v7x
topology: tpu7x:2x2x1
jax: 0.10.0
libtpu: 0.0.40
codegen_flags: <defaults>
</compile_context>

<pallas_src>
import functools

import jax
import jax.numpy as jnp
from jax.experimental import pallas as pl
from jax.experimental.pallas import tpu as pltpu

SUBLANE = 8  # f32 row (sublane) granularity.


def _round_up(n: int, m: int) -> int:
    return ((n + m - 1) // m) * m


def policy_net_kernel(x_ref, w1_ref, b1_ref, w2_ref, b2_ref, out_ref):
    # Two MXU matmuls with f32 accumulation + VPU bias adds / relu.
    # Feature dims (42, 64, 6) are lane-padded in-vreg by Mosaic; weights and
    # biases are VMEM-resident (constant index_map), only x/out stream.
    x = x_ref[...]                                                    # (bm, 42)
    h = jnp.dot(x, w1_ref[...], preferred_element_type=jnp.float32)   # (bm, 64)
    h = jnp.maximum(h + b1_ref[...], 0.0)                             # relu
    o = jnp.dot(h, w2_ref[...], preferred_element_type=jnp.float32)   # (bm, 6)
    out_ref[...] = (o + b2_ref[...]).astype(out_ref.dtype)


@functools.partial(jax.jit, static_argnames=("block_rows",))
def policy_net_forward(x, w1, b1, w2, b2, *, block_rows=2048):
    """x: (B, state_dim) f32 -> logits (B, action_dim) f32.

    w1: (state_dim, hidden), b1: (1, hidden),
    w2: (hidden, action_dim), b2: (1, action_dim).
    """
    B, state_dim = x.shape
    hidden = w1.shape[1]
    action_dim = w2.shape[1]

    # Row tile:
    #  * at most block_rows rows per grid step (amortizes per-step overhead),
    #  * at most ceil(B/2) rounded to SUBLANE, so large/mid batches always
    #    yield >= 2 grid steps and both v7x TensorCores get work,
    #  * at least SUBLANE rows (sublane-aligned block even for tiny batches).
    half = _round_up(pl.cdiv(B, 2), SUBLANE)
    bm = max(SUBLANE, min(block_rows, half))
    grid = (pl.cdiv(B, bm),)  # ragged last block handled by Pallas.

    return pl.pallas_call(
        policy_net_kernel,
        out_shape=jax.ShapeDtypeStruct((B, action_dim), jnp.float32),
        grid=grid,
        in_specs=[
            pl.BlockSpec((bm, state_dim), lambda i: (i, 0)),      # x: streams
            pl.BlockSpec((state_dim, hidden), lambda i: (0, 0)),  # w1: resident
            pl.BlockSpec((1, hidden), lambda i: (0, 0)),          # b1: resident
            pl.BlockSpec((hidden, action_dim), lambda i: (0, 0)), # w2: resident
            pl.BlockSpec((1, action_dim), lambda i: (0, 0)),      # b2: resident
        ],
        out_specs=pl.BlockSpec((bm, action_dim), lambda i: (i, 0)),
        compiler_params=pltpu.CompilerParams(
            # Batch rows are independent -> shards grid steps across the 2 TCs
            # on v7x; harmless no-op on single-TC v5e/v6e.
            dimension_semantics=("parallel",),
        ),
    )(x, w1, b1, w2, b2)


def reference_forward(x, w1, b1, w2, b2):
    h = jnp.maximum(x @ w1 + b1, 0.0)
    return h @ w2 + b2


if __name__ == "__main__":
    MAX_LEN = 40
    state_dim = MAX_LEN + 1 + 1   # 42
    action_dim = 6
    hidden_size = 64
    batch = 2

    key = jax.random.PRNGKey(0)
    kx, k1, k2, k3, k4 = jax.random.split(key, 5)

    # Deterministic synthetic parameters (nn.Linear-style uniform init scale).
    x = jax.random.normal(kx, (batch, state_dim), dtype=jnp.float32)
    bound1 = 1.0 / jnp.sqrt(state_dim)
    w1 = jax.random.uniform(k1, (state_dim, hidden_size), jnp.float32, -bound1, bound1)
    b1 = jax.random.uniform(k2, (1, hidden_size), jnp.float32, -bound1, bound1)
    bound2 = 1.0 / jnp.sqrt(hidden_size)
    w2 = jax.random.uniform(k3, (hidden_size, action_dim), jnp.float32, -bound2, bound2)
    b2 = jax.random.uniform(k4, (1, action_dim), jnp.float32, -bound2, bound2)

    logits = policy_net_forward(x, w1, b1, w2, b2)
    jax.block_until_ready(logits)

    ref = reference_forward(x, w1, b1, w2, b2)
    assert logits.shape == (batch, action_dim)
    assert jnp.allclose(logits, ref, atol=1e-5, rtol=1e-5)

    # Batched call exercising the ragged last block and multi-step grid.
    xb = jax.random.normal(kx, (1024 + 3, state_dim), dtype=jnp.float32)
    logits_b = policy_net_forward(xb, w1, b1, w2, b2)
    jax.block_until_ready(logits_b)
    assert logits_b.shape == (1027, action_dim)
    assert jnp.allclose(logits_b, reference_forward(xb, w1, b1, w2, b2),
                        atol=1e-5, rtol=1e-5)

    print("KERNEL_OK")
</pallas_src>

<mosaic_0001>
module attributes {stable_mosaic.version = 11 : i64} {
  func.func @policy_net_kernel(%arg0: i32, %arg1: memref<8x42xf32, #tpu.memory_space<vmem>>, %arg2: memref<42x64xf32, #tpu.memory_space<vmem>>, %arg3: memref<1x64xf32, #tpu.memory_space<vmem>>, %arg4: memref<64x6xf32, #tpu.memory_space<vmem>>, %arg5: memref<1x6xf32, #tpu.memory_space<vmem>>, %arg6: memref<8x6xf32, #tpu.memory_space<vmem>>) attributes {dimension_semantics = [#tpu.dimension_semantics<parallel>], iteration_bounds = array<i64: 1>, scalar_prefetch = 0 : i64, scratch_operands = 0 : i64, tpu.core_type = #tpu.core_type<tc>, window_params = [{transform_indices = @transform_0, window_bounds = array<i64: 8, 42>}, {pipeline_mode = #tpu.pipeline_mode<synchronous>, transform_indices = @transform_1, window_bounds = array<i64: 42, 64>}, {pipeline_mode = #tpu.pipeline_mode<synchronous>, transform_indices = @transform_2, window_bounds = array<i64: 1, 64>}, {pipeline_mode = #tpu.pipeline_mode<synchronous>, transform_indices = @transform_3, window_bounds = array<i64: 64, 6>}, {pipeline_mode = #tpu.pipeline_mode<synchronous>, transform_indices = @transform_4, window_bounds = array<i64: 1, 6>}, {transform_indices = @transform_5, window_bounds = array<i64: 8, 6>}]} {
    %c0 = arith.constant 0 : index
    %c0_0 = arith.constant 0 : index
    %0 = vector.load %arg1[%c0, %c0_0] : memref<8x42xf32, #tpu.memory_space<vmem>>, vector<8x42xf32>
    %c0_1 = arith.constant 0 : index
    %c0_2 = arith.constant 0 : index
    %1 = vector.load %arg2[%c0_1, %c0_2] : memref<42x64xf32, #tpu.memory_space<vmem>>, vector<42x64xf32>
    %cst = arith.constant dense<0.000000e+00> : vector<8x64xf32>
    %2 = tpu.matmul %0, %1, %cst {dimension_numbers = #tpu.dot_dimension_numbers<[1], [0], [0], [1], [0, 0, 1, 1], [], []>} : vector<8x42xf32>, vector<42x64xf32>, vector<8x64xf32> -> vector<8x64xf32>
    %c0_3 = arith.constant 0 : index
    %c0_4 = arith.constant 0 : index
    %3 = vector.load %arg3[%c0_3, %c0_4] : memref<1x64xf32, #tpu.memory_space<vmem>>, vector<1x64xf32>
    %4 = vector.broadcast %3 : vector<1x64xf32> to vector<8x64xf32>
    %5 = arith.addf %2, %4 : vector<8x64xf32>
    %cst_5 = arith.constant 0.000000e+00 : f32
    %6 = vector.broadcast %cst_5 : f32 to vector<8x64xf32>
    %7 = arith.maximumf %5, %6 : vector<8x64xf32>
    %c0_6 = arith.constant 0 : index
    %c0_7 = arith.constant 0 : index
    %8 = vector.load %arg4[%c0_6, %c0_7] : memref<64x6xf32, #tpu.memory_space<vmem>>, vector<64x6xf32>
    %cst_8 = arith.constant dense<0.000000e+00> : vector<8x6xf32>
    %9 = tpu.matmul %7, %8, %cst_8 {dimension_numbers = #tpu.dot_dimension_numbers<[1], [0], [0], [1], [0, 0, 1, 1], [], []>} : vector<8x64xf32>, vector<64x6xf32>, vector<8x6xf32> -> vector<8x6xf32>
    %c0_9 = arith.constant 0 : index
    %c0_10 = arith.constant 0 : index
    %10 = vector.load %arg5[%c0_9, %c0_10] : memref<1x6xf32, #tpu.memory_space<vmem>>, vector<1x6xf32>
    %11 = vector.broadcast %10 : vector<1x6xf32> to vector<8x6xf32>
    %12 = arith.addf %9, %11 : vector<8x6xf32>
    %c0_11 = arith.constant 0 : index
    %c0_12 = arith.constant 0 : index
    %13 = vector.load %arg6[%c0_11, %c0_12] : memref<8x6xf32, #tpu.memory_space<vmem>>, vector<8x6xf32>
    tpu.vector_store %arg6[%c0_11, %c0_12], %12 {strides = array<i32>} : memref<8x6xf32, #tpu.memory_space<vmem>>, vector<8x6xf32>,
    return
  }
  func.func @transform_0(%arg0: i32) -> (i32, i32) {
    %c0_i32 = arith.constant 0 : i32
    %c0_i32_0 = arith.constant 0 : i32
    return %arg0, %c0_i32 : i32, i32
  }
  func.func @transform_1(%arg0: i32) -> (i32, i32) {
    %c0_i32 = arith.constant 0 : i32
    %c0_i32_0 = arith.constant 0 : i32
    %c0_i32_1 = arith.constant 0 : i32
    return %c0_i32, %c0_i32_0 : i32, i32
  }
  func.func @transform_2(%arg0: i32) -> (i32, i32) {
    %c0_i32 = arith.constant 0 : i32
    %c0_i32_0 = arith.constant 0 : i32
    %c0_i32_1 = arith.constant 0 : i32
    return %c0_i32, %c0_i32_0 : i32, i32
  }
  func.func @transform_3(%arg0: i32) -> (i32, i32) {
    %c0_i32 = arith.constant 0 : i32
    %c0_i32_0 = arith.constant 0 : i32
    %c0_i32_1 = arith.constant 0 : i32
    return %c0_i32, %c0_i32_0 : i32, i32
  }
  func.func @transform_4(%arg0: i32) -> (i32, i32) {
    %c0_i32 = arith.constant 0 : i32
    %c0_i32_0 = arith.constant 0 : i32
    %c0_i32_1 = arith.constant 0 : i32
    return %c0_i32, %c0_i32_0 : i32, i32
  }
  func.func @transform_5(%arg0: i32) -> (i32, i32) {
    %c0_i32 = arith.constant 0 : i32
    %c0_i32_0 = arith.constant 0 : i32
    return %arg0, %c0_i32 : i32, i32
  }
}

</mosaic_0001>

<llo_original>
// kernel: policy_net_forward.1
$region0: #{policy_net_forward.1}
  #allocation0 [shape = 'u32[]', space=smem, size = 0x4, offset = 0x4, fixed_abs, tag = 'smem constant byte address 0x4 - core index']
  #allocation1 [shape = 'u32[144,128]{1,0:T(1,128)}', space=vmem, size = 0x12000, scoped, tag = 'internal scratch']
  %s0 = inlined_call_operand.vmem [shape: f32[2,42], index: 0, kind: input, shape index: {}]
  %s1 = inlined_call_operand.vmem [shape: f32[42,64], index: 1, kind: input, shape index: {}]
  %s2 = inlined_call_operand.vmem [shape: f32[1,64], index: 2, kind: input, shape index: {}]
  %s3 = inlined_call_operand.vmem [shape: f32[64,6], index: 3, kind: input, shape index: {}]
  %s4 = inlined_call_operand.vmem [shape: f32[1,6], index: 4, kind: input, shape index: {}]
  %s5 = inlined_call_operand.hbm [shape: f32[2,6], index: 5, kind: output, shape index: {}]
  %s6 = sld [smem:[#allocation0]]
  $region30: #{policy_net_forward.1} parent=0
    _
  %s8 = ssub.s32 1, %s6
  %s9 = scalar_select 0, %s8, %s6
  $region1: #{policy_net_forward.1} parent=0
    #allocation2 [shape = 'u8[4096]{0}', space=vmem, size = 0x1000, scoped, tag = 'output window, operand 0, single buffered']
    #allocation3 [shape = 's32[1]{0}', space=sflag, size = 0x4, scoped, tag = 'scoped memory for policy_net_forward.1']
    %10 = vsyncpa [#allocation3], 0
    // Predicated region
    $region2: #{policy_net_forward.1} parent=1 // pred_check
      _
    $region3: #{policy_net_forward.1} parent=1 // pred_check_branch
      %12 = sbr.rel (0) target = $region5
    $region4: #{policy_net_forward.1} parent=1 // pred_region
      _
    $region5: #{policy_net_forward.1} parent=1 // pred_fallthru
      _
    // Predicated region
    $region6: #{policy_net_forward.1} parent=1 // pred_check
      _
    $region7: #{policy_net_forward.1} parent=1 // pred_check_branch
      %14 = sbr.rel (0) target = $region9
    $region8: #{policy_net_forward.1} parent=1 // pred_region
      _
    $region9: #{policy_net_forward.1} parent=1 // pred_fallthru
      _
    // Predicated region
    $region10: #{policy_net_forward.1} parent=1 // pred_check
      _
    $region11: #{policy_net_forward.1} parent=1 // pred_check_branch
      %16 = sbr.rel (0) target = $region13
    $region12: #{policy_net_forward.1} parent=1 // pred_region
      _
    $region13: #{policy_net_forward.1} parent=1 // pred_fallthru
      _
    // Predicated region
    $region14: #{policy_net_forward.1} parent=1 // pred_check
      _
    $region15: #{policy_net_forward.1} parent=1 // pred_check_branch
      %18 = sbr.rel (0) target = $region17
    $region16: #{policy_net_forward.1} parent=1 // pred_region
      _
    $region17: #{policy_net_forward.1} parent=1 // pred_fallthru
      _
    // Predicated region
    $region18: #{policy_net_forward.1} parent=1 // pred_check
      _
    $region19: #{policy_net_forward.1} parent=1 // pred_check_branch
      %20 = sbr.rel (0) target = $region21
    $region20: #{policy_net_forward.1} parent=1 // pred_region
      _
    $region21: #{policy_net_forward.1} parent=1 // pred_fallthru
      _
    %v21 = vld [vmem:[%s0] sm:$0xff]
    %v22 = vld [vmem:[%s1] sm:$0xff]
    %v23 = vld [vmem:[%s1 + $0x8] sm:$0xff]
    %v24 = vld [vmem:[%s1 + $0x10] sm:$0xff]
    %v25 = vld [vmem:[%s1 + $0x18] sm:$0xff]
    %v26 = vld [vmem:[%s1 + $0x20] sm:$0xff]
    %v27 = vld [vmem:[%s1 + $0x28] sm:$0x3]
    %v28 = vld [vmem:[%s2] sm:$0x1]
    %v30 = vlaneseq
    %v31 = vshrl.u32 %v30, 7
    %v32 = vsub.s32 0, %v31
    %v33 = vrot.slane %v28, %v32
    %vm35 = vcmask 343040
    %v37 = vsel %vm35, %v21, 0
    %vm39 = vcmask 1041408
    %v41 = vsel %vm39, %v27, 0
    %43 = vmatprep.subr.mxu0 0.0
    %44 = vmatpush1.msra.mxu0 %v22
    %45 = vmatprep.subr.mxu0 0.0
    %46 = vmatpush1.msra.mxu0 %v23
    %47 = vmatprep.subr.mxu0 0.0
    %48 = vmatpush1.msra.mxu0 %v24
    %49 = vmatprep.subr.mxu0 0.0
    %50 = vmatpush1.msra.mxu0 %v25
    %51 = vmatprep.subr.mxu0 0.0
    %52 = vmatpush1.msra.mxu0 %v26
    %53 = vmatprep.subr.mxu0 0.0
    %54 = vmatpush1.msra.mxu0 %v41
    %55 = vmatprep.subr.mxu0 0.0
    %56 = vmatpush1.msra.mxu0 0.0
    %57 = vmatprep.subr.mxu0 0.0
    %58 = vmatpush1.msra.mxu0 0.0
    %59 = vmatprep.subr.mxu0 0.0
    %60 = vmatpush1.msra.mxu0 0.0
    %61 = vmatprep.subr.mxu0 0.0
    %62 = vmatpush1.msra.mxu0 0.0
    %63 = vmatprep.subr.mxu0 0.0
    %64 = vmatpush1.msra.mxu0 0.0
    %65 = vmatprep.subr.mxu0 0.0
    %66 = vmatpush1.msra.mxu0 0.0
    %67 = vmatprep.subr.mxu0 0.0
    %68 = vmatpush1.msra.mxu0 0.0
    %69 = vmatprep.subr.mxu0 0.0
    %70 = vmatpush1.msra.mxu0 0.0
    %71 = vmatprep.subr.mxu0 0.0
    %72 = vmatpush1.msra.mxu0 0.0
    %73 = vmatprep.subr.mxu0 0.0
    %74 = vmatpush1.msra.mxu0 0.0
    %75 = vmatprep.subr.mxu0 0.0
    %76 = vmatpush1.msra.mxu0 0.0
    %77 = vmatprep.subr.mxu0 0.0
    %78 = vmatpush1.msra.mxu0 0.0
    %79 = vmatprep.subr.mxu0 0.0
    %80 = vmatpush1.msra.mxu0 0.0
    %81 = vmatprep.subr.mxu0 0.0
    %82 = vmatpush1.msra.mxu0 0.0
    %83 = vmatprep.subr.mxu0 0.0
    %84 = vmatpush1.msra.mxu0 0.0
    %85 = vmatprep.subr.mxu0 0.0
    %86 = vmatpush1.msra.mxu0 0.0
    %87 = vmatprep.subr.mxu0 0.0
    %88 = vmatpush1.msra.mxu0 0.0
    %89 = vmatprep.subr.mxu0 0.0
    %90 = vmatpush1.msra.mxu0 0.0
    %91 = vmatprep.subr.mxu0 0.0
    %92 = vmatpush1.msra.mxu0 0.0
    %93 = vmatprep.subr.mxu0 0.0
    %94 = vmatpush1.msra.mxu0 0.0
    %95 = vmatprep.subr.mxu0 0.0
    %96 = vmatpush1.msra.mxu0 0.0
    %97 = vmatprep.subr.mxu0 0.0
    %98 = vmatpush1.msra.mxu0 0.0
    %99 = vmatprep.subr.mxu0 0.0
    %100 = vmatpush1.msra.mxu0 0.0
    %101 = vmatprep.subr.mxu0 0.0
    %102 = vmatpush1.msra.mxu0 0.0
    %103 = vmatprep.subr.mxu0 0.0
    %104 = vmatpush1.msra.mxu0 0.0
    %105 = vmatprep.subr.mxu0 0.0
    %106 = vmatpush1.msra.mxu0 0.0
    %107 = vmatprep.mubr.f32.mxu0 0.0
    %108 = vmatmul.mubr.f32.gmra.mrb[0].mxu0 %v37
    %v109 = vpop.f32.mrb[0].mxu0
    %v110 = vadd.f32 %v33, %v109
    %v111 = vpop.f32.mrb[0].mxu0
    %112 = vdwg.mxu0
    %v113 = vmax.f32 %v110, 0.0
    %v114 = vld [vmem:[%s3] sm:$0xff]
    %v115 = vld [vmem:[%s3 + $0x8] sm:$0xff]
    %v116 = vld [vmem:[%s3 + $0x10] sm:$0xff]
    %v117 = vld [vmem:[%s3 + $0x18] sm:$0xff]
    %v118 = vld [vmem:[%s3 + $0x20] sm:$0xff]
    %v119 = vld [vmem:[%s3 + $0x28] sm:$0xff]
    %v120 = vld [vmem:[%s3 + $0x30] sm:$0xff]
    %v121 = vld [vmem:[%s3 + $0x38] sm:$0xff]
    %v122 = vld [vmem:[%s4] sm:$0x1]
    %v124 = vlaneseq
    %v125 = vshrl.u32 %v124, 7
    %v126 = vsub.s32 0, %v125
    %v127 = vrot.slane %v122, %v126
    %vm129 = vcmask 523264
    %v131 = vsel %vm129, %v113, 0
    %133 = vmatprep.subr.mxu0 0.0
    %134 = vmatpush1.msra.mxu0 %v114
    %135 = vmatprep.subr.mxu0 0.0
    %136 = vmatpush1.msra.mxu0 %v115
    %137 = vmatprep.subr.mxu0 0.0
    %138 = vmatpush1.msra.mxu0 %v116
    %139 = vmatprep.subr.mxu0 0.0
    %140 = vmatpush1.msra.mxu0 %v117
    %141 = vmatprep.subr.mxu0 0.0
    %142 = vmatpush1.msra.mxu0 %v118
    %143 = vmatprep.subr.mxu0 0.0
    %144 = vmatpush1.msra.mxu0 %v119
    %145 = vmatprep.subr.mxu0 0.0
    %146 = vmatpush1.msra.mxu0 %v120
    %147 = vmatprep.subr.mxu0 0.0
    %148 = vmatpush1.msra.mxu0 %v121
    %149 = vmatprep.subr.mxu0 0.0
    %150 = vmatpush1.msra.mxu0 0.0
    %151 = vmatprep.subr.mxu0 0.0
    %152 = vmatpush1.msra.mxu0 0.0
    %153 = vmatprep.subr.mxu0 0.0
    %154 = vmatpush1.msra.mxu0 0.0
    %155 = vmatprep.subr.mxu0 0.0
    %156 = vmatpush1.msra.mxu0 0.0
    %157 = vmatprep.subr.mxu0 0.0
    %158 = vmatpush1.msra.mxu0 0.0
    %159 = vmatprep.subr.mxu0 0.0
    %160 = vmatpush1.msra.mxu0 0.0
    %161 = vmatprep.subr.mxu0 0.0
    %162 = vmatpush1.msra.mxu0 0.0
    %163 = vmatprep.subr.mxu0 0.0
    %164 = vmatpush1.msra.mxu0 0.0
    %165 = vmatprep.subr.mxu0 0.0
    %166 = vmatpush1.msra.mxu0 0.0
    %167 = vmatprep.subr.mxu0 0.0
    %168 = vmatpush1.msra.mxu0 0.0
    %169 = vmatprep.subr.mxu0 0.0
    %170 = vmatpush1.msra.mxu0 0.0
    %171 = vmatprep.subr.mxu0 0.0
    %172 = vmatpush1.msra.mxu0 0.0
    %173 = vmatprep.subr.mxu0 0.0
    %174 = vmatpush1.msra.mxu0 0.0
    %175 = vmatprep.subr.mxu0 0.0
    %176 = vmatpush1.msra.mxu0 0.0
    %177 = vmatprep.subr.mxu0 0.0
    %178 = vmatpush1.msra.mxu0 0.0
    %179 = vmatprep.subr.mxu0 0.0
    %180 = vmatpush1.msra.mxu0 0.0
    %181 = vmatprep.subr.mxu0 0.0
    %182 = vmatpush1.msra.mxu0 0.0
    %183 = vmatprep.subr.mxu0 0.0
    %184 = vmatpush1.msra.mxu0 0.0
    %185 = vmatprep.subr.mxu0 0.0
    %186 = vmatpush1.msra.mxu0 0.0
    %187 = vmatprep.subr.mxu0 0.0
    %188 = vmatpush1.msra.mxu0 0.0
    %189 = vmatprep.subr.mxu0 0.0
    %190 = vmatpush1.msra.mxu0 0.0
    %191 = vmatprep.subr.mxu0 0.0
    %192 = vmatpush1.msra.mxu0 0.0
    %193 = vmatprep.subr.mxu0 0.0
    %194 = vmatpush1.msra.mxu0 0.0
    %195 = vmatprep.subr.mxu0 0.0
    %196 = vmatpush1.msra.mxu0 0.0
    %197 = vmatprep.mubr.f32.mxu0 0.0
    %198 = vmatmul.mubr.f32.gmra.mrb[0].mxu0 %v131
    %v199 = vpop.f32.mrb[0].mxu0
    %v200 = vadd.f32 %v127, %v199
    %v201 = vpop.f32.mrb[0].mxu0
    %202 = vdwg.mxu0
    %vm203 = vcmask 48128
    %204 = vst.msk [vmem:[#allocation2] sm:$0xff] %vm203, %v200
    // Predicated region
    $region22: #{policy_net_forward.1} parent=1 // pred_check
      _
    $region23: #{policy_net_forward.1} parent=1 // pred_check_branch
      %206 = sbr.rel (0) target = $region25
    $region24: #{policy_net_forward.1} parent=1 // pred_region
      %s208 = ssub.s32 128, 32
      %209 = vsyncadd [#allocation3], %s208
      %s210 = sshll.u32 [#allocation2], 4
      %s211 = int_to_ptr.vmem [resolvable:$true] %s210
      %216 = dma.vmem_to_hbm [thread:$0]  %s211, 32, %s5, [#allocation3], 32, 32, 2
    $region25: #{policy_net_forward.1} parent=1 // pred_fallthru
      _
    // Predicated region
    $region26: #{policy_net_forward.1} parent=1 // pred_check
      _
    $region27: #{policy_net_forward.1} parent=1 // pred_check_branch
      %218 = sbr.rel (0) target = $region29
    $region28: #{policy_net_forward.1} parent=1 // pred_region
      %219 = dma.done [#allocation3], 128
    $region29: #{policy_net_forward.1} parent=1 // pred_fallthru
      _
    %220 = vsyncpa [#allocation3], 1

</llo_original>
